<compile_context>
chip_gen: v6e
topology: v6e:2x2x1
jax: 0.10.0
libtpu: 0.0.40
codegen_flags: <defaults>
</compile_context>

<pallas_src>
import functools

import jax
import jax.numpy as jnp
from jax.experimental import pallas as pl
from jax.experimental.pallas import tpu as pltpu

LANE = 128


def _round_up(x, m):
    return (x + m - 1) // m * m


def _pad2(m, rows, cols, dtype):
    out = jnp.zeros((rows, cols), dtype)
    return out.at[: m.shape[0], : m.shape[1]].set(m.astype(dtype))


def _vmem_limit_bytes():
    """Generation-aware VMEM budget: leave headroom below physical capacity."""
    cap = 64 * 1024 * 1024
    try:
        info = pltpu.get_tpu_info()
        cap = int(getattr(info, "vmem_capacity_bytes", cap))
    except Exception:
        pass
    # ~85% of physical, capped: ~54 MiB on v7x (64 MiB phys), ~108 MiB on v5e/v6e (128 MiB).
    return min(int(cap * 0.85), 112 * 1024 * 1024)


def _agg_vmem_bytes(tile_m, tile_k, c_max):
    """Rough VMEM footprint of one fused-aggregate call."""
    a = 2 * tile_m * tile_k * 2       # A tile, double-buffered, bf16
    t = 2 * tile_k * c_max * 2        # T K-tile, double-buffered, bf16
    w = 2 * c_max * c_max * 2         # resident next-layer weights
    b = 2 * c_max * 4                 # resident bias
    o = 2 * tile_m * c_max * 4        # output tile, double-buffered, worst case f32
    acc = tile_m * c_max * 4          # f32 accumulator scratch
    return a + t + w + b + o + acc


def _choose_tiling(n, c_max, vmem_bytes):
    """Pick (tile_m, tile_k, n_p): prefer big row tiles and a fully resident T; K-tile the
    contraction only when the resident plan does not fit the VMEM budget."""
    n128 = _round_up(max(n, LANE), LANE)
    budget = int(vmem_bytes * 0.55)   # headroom for compiler scratch / the transform call
    for tile_m in (512, 256, 128):
        # keep >= 4 row tiles when enlarging (>= 2 per TensorCore on a v7x megacore)
        if tile_m > 128 and n128 < 4 * tile_m:
            continue
        n_p = _round_up(n128, tile_m)
        if _agg_vmem_bytes(tile_m, n_p, c_max) <= budget:    # resident T, single K step
            return tile_m, n_p, n_p
        for tile_k in (4096, 2048, 1024, 512, 256, 128):     # K-tiled contraction
            if tile_k >= n128:
                continue
            n_p = _round_up(n128, max(tile_m, tile_k))
            if _agg_vmem_bytes(tile_m, tile_k, c_max) <= budget:
                return tile_m, tile_k, n_p
    n_p = _round_up(n128, LANE)
    return LANE, n_p, n_p


# ----------------------------------------------------------------------------
# Glue: GCN-normalized dense adjacency built directly into the padded buffer.
# A_hat[i, j] != 0 iff edge j->i exists (PyG source->target convention) or i == j.
# ----------------------------------------------------------------------------
def normalized_adjacency_padded(edge_index, num_nodes, n_pad):
    src = edge_index[0]
    dst = edge_index[1]
    a = jnp.zeros((n_pad, n_pad), jnp.float32)
    a = a.at[dst, src].add(1.0)                              # message flows source -> target
    idx = jnp.arange(num_nodes)
    diag = a[idx, idx]
    # add_remaining_self_loops: only nodes without an explicit self-loop get weight 1
    a = a.at[idx, idx].set(jnp.where(diag > 0.0, diag, 1.0))
    deg = jnp.sum(a, axis=1)
    d = jnp.where(deg > 0.0, jax.lax.rsqrt(deg), 0.0)
    # fused D^-1/2 (A+I) D^-1/2 scaling + bf16 cast: one read / one (half-size) write pass
    return (a * d[:, None] * d[None, :]).astype(jnp.bfloat16)


# ----------------------------------------------------------------------------
# Kernels
# ----------------------------------------------------------------------------
def transform_kernel(h_ref, w_ref, t_ref):
    """T row-tile = H row-tile @ W  (layer-1 feature transform; f32 acc, bf16 out)."""
    t_ref[...] = jnp.dot(
        h_ref[...], w_ref[...], preferred_element_type=jnp.float32
    ).astype(t_ref.dtype)


def aggregate_kernel(a_ref, t_ref, b_ref, *rest, has_next, num_classes):
    """K-tiled accumulate of A_tile @ T_ktile; the epilogue adds the bias and applies either
    ReLU + the next layer's transform (fused) or the masked log_softmax (final layer)."""
    if has_next:
        w_next_ref, out_ref, acc_ref = rest
    else:
        out_ref, acc_ref = rest

    k = pl.program_id(1)

    @pl.when(k == 0)
    def _():
        acc_ref[...] = jnp.zeros_like(acc_ref)

    acc_ref[...] += jnp.dot(a_ref[...], t_ref[...], preferred_element_type=jnp.float32)

    @pl.when(k == pl.num_programs(1) - 1)
    def _():
        h = acc_ref[...] + b_ref[...]
        if has_next:
            h = jnp.maximum(h, 0.0)   # ReLU
            # TODO(synk): dropout(p=0.2) is identity here (inference / training=False); a
            # training variant would mask h via pltpu.prng_seed + pltpu.prng_random_bits.
            out_ref[...] = jnp.dot(
                h.astype(jnp.bfloat16), w_next_ref[...],
                preferred_element_type=jnp.float32,
            ).astype(out_ref.dtype)
        else:
            # Mask padded class columns, then fused numerically-stable log_softmax (dim=1).
            col = jax.lax.broadcasted_iota(jnp.int32, h.shape, 1)
            h = jnp.where(col < num_classes, h, -jnp.inf)
            m = jnp.max(h, axis=1, keepdims=True)
            shifted = h - m
            lse = jnp.log(jnp.sum(jnp.exp(shifted), axis=1, keepdims=True))
            out_ref[...] = (shifted - lse).astype(out_ref.dtype)


# ----------------------------------------------------------------------------
# pallas_call wrappers
# ----------------------------------------------------------------------------
def _transform(h, w, tile_m, vmem_limit):
    n_p, cin = h.shape
    cout = w.shape[1]
    cost = pl.CostEstimate(
        flops=2 * n_p * cin * cout,
        transcendentals=0,
        bytes_accessed=h.size * h.dtype.itemsize
        + w.size * w.dtype.itemsize
        + n_p * cout * 2,
    )
    return pl.pallas_call(
        transform_kernel,
        out_shape=jax.ShapeDtypeStruct((n_p, cout), jnp.bfloat16),
        grid_spec=pltpu.PrefetchScalarGridSpec(
            num_scalar_prefetch=0,
            grid=(n_p // tile_m,),
            in_specs=[
                pl.BlockSpec((tile_m, cin), lambda i: (i, 0)),   # H row tile streams
                pl.BlockSpec((cin, cout), lambda i: (0, 0)),     # W resident
            ],
            out_specs=pl.BlockSpec((tile_m, cout), lambda i: (i, 0)),
        ),
        compiler_params=pltpu.CompilerParams(
            dimension_semantics=("parallel",),
            vmem_limit_bytes=vmem_limit,
        ),
        cost_estimate=cost,
    )(h, w)


def _aggregate(a, t, b, w_next, *, num_classes, out_dtype, tile_m, tile_k, vmem_limit):
    n_p = a.shape[0]
    c_in = t.shape[1]
    has_next = w_next is not None
    c_out = w_next.shape[1] if has_next else c_in
    grid = (n_p // tile_m, n_p // tile_k)

    in_specs = [
        pl.BlockSpec((tile_m, tile_k), lambda i, k: (i, k)),   # A_hat tile streams
        pl.BlockSpec((tile_k, c_in), lambda i, k: (k, 0)),     # T K-tile (resident if n_k==1)
        pl.BlockSpec((1, c_in), lambda i, k: (0, 0)),          # bias resident (lane-dense)
    ]
    operands = [a, t, b]
    if has_next:
        in_specs.append(pl.BlockSpec((c_in, c_out), lambda i, k: (0, 0)))  # W_{l+1} resident
        operands.append(w_next)

    kern = functools.partial(aggregate_kernel, has_next=has_next, num_classes=num_classes)
    out_itemsize = jnp.dtype(out_dtype).itemsize
    cost = pl.CostEstimate(
        flops=2 * n_p * n_p * c_in + (2 * n_p * c_in * c_out if has_next else 0),
        transcendentals=0 if has_next else n_p * c_out,
        bytes_accessed=sum(x.size * x.dtype.itemsize for x in operands)
        + n_p * c_out * out_itemsize,
    )
    return pl.pallas_call(
        kern,
        out_shape=jax.ShapeDtypeStruct((n_p, c_out), out_dtype),
        grid_spec=pltpu.PrefetchScalarGridSpec(
            num_scalar_prefetch=0,
            grid=grid,
            in_specs=in_specs,
            out_specs=pl.BlockSpec((tile_m, c_out), lambda i, k: (i, 0)),
            scratch_shapes=[pltpu.VMEM((tile_m, c_in), jnp.float32)],
        ),
        compiler_params=pltpu.CompilerParams(
            dimension_semantics=("parallel", "arbitrary"),
            vmem_limit_bytes=vmem_limit,
        ),
        cost_estimate=cost,
    )(*operands)


# ----------------------------------------------------------------------------
# Full forward:
#   T1 = X @ W1
#   T2 = relu(A @ T1 + b1) @ W2          (GCNConv1 + ReLU + dropout(eval) fused with xform2)
#   T3 = relu(A @ T2 + b2) @ W3          (GCNConv2 + ReLU + dropout(eval) fused with xform3)
#   out = log_softmax(A @ T3 + b3, dim=1)
# ----------------------------------------------------------------------------
def gnn_forward(x, edge_index, params):
    """x: [N, in_channels] float32, edge_index: [2, E] int32 -> [N, out_channels] log-probs."""
    w1, b1, w2, b2, w3, b3 = params
    n, in_ch = x.shape
    hid = w1.shape[1]
    out_ch = w3.shape[1]

    cin_p = _round_up(in_ch, LANE)
    hid_p = _round_up(hid, LANE)
    cout_p = _round_up(out_ch, LANE)
    c_max = max(cin_p, hid_p, cout_p)

    vmem_limit = _vmem_limit_bytes()
    tile_m, tile_k, n_p = _choose_tiling(n, c_max, vmem_limit)

    a_p = normalized_adjacency_padded(edge_index, n, n_p)      # bf16, built at padded size

    h0 = _pad2(x, n_p, cin_p, jnp.bfloat16)
    w1_p = _pad2(w1, cin_p, hid_p, jnp.bfloat16)
    w2_p = _pad2(w2, hid_p, hid_p, jnp.bfloat16)
    w3_p = _pad2(w3, hid_p, cout_p, jnp.bfloat16)
    b1_p = _pad2(b1, 1, hid_p, jnp.float32)
    b2_p = _pad2(b2, 1, hid_p, jnp.float32)
    b3_p = _pad2(b3, 1, cout_p, jnp.float32)

    t1 = _transform(h0, w1_p, tile_m, vmem_limit)
    t2 = _aggregate(a_p, t1, b1_p, w2_p, num_classes=None, out_dtype=jnp.bfloat16,
                    tile_m=tile_m, tile_k=tile_k, vmem_limit=vmem_limit)
    t3 = _aggregate(a_p, t2, b2_p, w3_p, num_classes=None, out_dtype=jnp.bfloat16,
                    tile_m=tile_m, tile_k=tile_k, vmem_limit=vmem_limit)
    out_p = _aggregate(a_p, t3, b3_p, None, num_classes=out_ch, out_dtype=jnp.float32,
                       tile_m=tile_m, tile_k=tile_k, vmem_limit=vmem_limit)

    return out_p[:n, :out_ch]


# ----------------------------------------------------------------------------
# Deterministic parameter init (Glorot-uniform weights, zero biases — PyG default).
# ----------------------------------------------------------------------------
def init_params(key, in_channels, hidden_channels, out_channels):
    def glorot(k, fan_in, fan_out):
        limit = jnp.sqrt(6.0 / (fan_in + fan_out))
        return jax.random.uniform(k, (fan_in, fan_out), jnp.float32, -limit, limit)

    k1, k2, k3 = jax.random.split(key, 3)
    w1 = glorot(k1, in_channels, hidden_channels)
    b1 = jnp.zeros((1, hidden_channels), jnp.float32)
    w2 = glorot(k2, hidden_channels, hidden_channels)
    b2 = jnp.zeros((1, hidden_channels), jnp.float32)
    w3 = glorot(k3, hidden_channels, out_channels)
    b3 = jnp.zeros((1, out_channels), jnp.float32)
    return (w1, b1, w2, b2, w3, b3)


if __name__ == "__main__":
    N, E = 16, 40
    IN_CH, HID_CH, OUT_CH = 8, 32, 4

    key = jax.random.PRNGKey(0)
    k_x, k_e, k_p = jax.random.split(key, 3)

    x = jax.random.normal(k_x, (N, IN_CH), jnp.float32)
    edge_index = jax.random.randint(k_e, (2, E), 0, N, jnp.int32)
    params = init_params(k_p, IN_CH, HID_CH, OUT_CH)

    out = gnn_forward(x, edge_index, params)
    out = jax.block_until_ready(out)

    assert out.shape == (N, OUT_CH)
    # log_softmax rows must exponentiate-sum to ~1
    assert bool(jnp.all(jnp.abs(jnp.sum(jnp.exp(out), axis=1) - 1.0) < 1e-3))
    print("KERNEL_OK")
</pallas_src>

<mosaic_0001>
module attributes {stable_mosaic.version = 11 : i64} {
  func.func @transform_kernel(%arg0: i32, %arg1: memref<128x128xbf16, #tpu.memory_space<vmem>>, %arg2: memref<128x128xbf16, #tpu.memory_space<vmem>>, %arg3: memref<128x128xbf16, #tpu.memory_space<vmem>>) attributes {dimension_semantics = [#tpu.dimension_semantics<parallel>], iteration_bounds = array<i64: 1>, scalar_prefetch = 0 : i64, scratch_operands = 0 : i64, tpu.core_type = #tpu.core_type<tc>, window_params = [{transform_indices = @transform_0, window_bounds = array<i64: 128, 128>}, {pipeline_mode = #tpu.pipeline_mode<synchronous>, transform_indices = @transform_1, window_bounds = array<i64: 128, 128>}, {transform_indices = @transform_2, window_bounds = array<i64: 128, 128>}]} {
    %c0 = arith.constant 0 : index
    %c0_0 = arith.constant 0 : index
    %0 = vector.load %arg1[%c0, %c0_0] : memref<128x128xbf16, #tpu.memory_space<vmem>>, vector<128x128xbf16>
    %c0_1 = arith.constant 0 : index
    %c0_2 = arith.constant 0 : index
    %1 = vector.load %arg2[%c0_1, %c0_2] : memref<128x128xbf16, #tpu.memory_space<vmem>>, vector<128x128xbf16>
    %cst = arith.constant dense<0.000000e+00> : vector<128x128xf32>
    %2 = tpu.matmul %0, %1, %cst {dimension_numbers = #tpu.dot_dimension_numbers<[1], [0], [0], [1], [0, 0, 1, 1], [], []>} : vector<128x128xbf16>, vector<128x128xbf16>, vector<128x128xf32> -> vector<128x128xf32>
    %3 = arith.truncf %2 : vector<128x128xf32> to vector<128x128xbf16>
    %c0_3 = arith.constant 0 : index
    %c0_4 = arith.constant 0 : index
    %4 = vector.load %arg3[%c0_3, %c0_4] : memref<128x128xbf16, #tpu.memory_space<vmem>>, vector<128x128xbf16>
    tpu.vector_store %arg3[%c0_3, %c0_4], %3 {strides = array<i32>} : memref<128x128xbf16, #tpu.memory_space<vmem>>, vector<128x128xbf16>,
    return
  }
  func.func @transform_0(%arg0: i32) -> (i32, i32) {
    %c0_i32 = arith.constant 0 : i32
    %c0_i32_0 = arith.constant 0 : i32
    return %arg0, %c0_i32 : i32, i32
  }
  func.func @transform_1(%arg0: i32) -> (i32, i32) {
    %c0_i32 = arith.constant 0 : i32
    %c0_i32_0 = arith.constant 0 : i32
    %c0_i32_1 = arith.constant 0 : i32
    return %c0_i32, %c0_i32_0 : i32, i32
  }
  func.func @transform_2(%arg0: i32) -> (i32, i32) {
    %c0_i32 = arith.constant 0 : i32
    %c0_i32_0 = arith.constant 0 : i32
    return %arg0, %c0_i32 : i32, i32
  }
}

</mosaic_0001>

<llo_original>
// kernel: tpu_custom_call.1
$region0: #{tpu_custom_call.1}
  #allocation0 [shape = 'u32[]', space=smem, size = 0x4, offset = 0x4, fixed_abs, tag = 'smem constant byte address 0x4 - core index']
  #allocation1 [shape = 'u32[144,128]{1,0:T(1,128)}', space=vmem, size = 0x12000, scoped, tag = 'internal scratch']
  %s0 = inlined_call_operand.hbm [shape: bf16[128,128], index: 0, kind: input, shape index: {}]
  %s1 = inlined_call_operand.hbm [shape: bf16[128,128], index: 1, kind: input, shape index: {}]
  %s2 = inlined_call_operand.hbm [shape: bf16[128,128], index: 2, kind: output, shape index: {}]
  %s3 = sld [smem:[#allocation0]]
  $region26: #{tpu_custom_call.1} parent=0
    _
  %s5 = ssub.s32 1, %s3
  %s6 = scalar_select 0, %s5, %s3
  $region1: #{tpu_custom_call.1} parent=0
    #allocation2 [shape = 'u8[32768]{0}', space=vmem, size = 0x8000, scoped, tag = 'input window, operand 0, single buffered']
    #allocation3 [shape = 's32[1]{0}', space=sflag, size = 0x4, scoped, tag = 'scoped memory for tpu_custom_call.1']
    #allocation4 [shape = 's32[1]{0}', space=sflag, size = 0x4, scoped, tag = 'scoped memory for tpu_custom_call.1']
    #allocation5 [shape = 'u8[32768]{0}', space=vmem, size = 0x8000, scoped, tag = 'input window, operand 1, single buffered']
    #allocation6 [shape = 's32[1]{0}', space=sflag, size = 0x4, scoped, tag = 'scoped memory for tpu_custom_call.1']
    #allocation7 [shape = 'u8[32768]{0}', space=vmem, size = 0x8000, scoped, tag = 'output window, operand 0, single buffered']
    %7 = vsyncpa [#allocation3], 0
    %8 = vsyncpa [#allocation6], 0
    %9 = vsyncpa [#allocation4], 0
    // Predicated region
    $region2: #{tpu_custom_call.1} parent=1 // pred_check
      _
    $region3: #{tpu_custom_call.1} parent=1 // pred_check_branch
      %11 = sbr.rel (0) target = $region5
    $region4: #{tpu_custom_call.1} parent=1 // pred_region
      %s13 = ssub.s32 1024, 1024
      %14 = vsyncadd [#allocation3], %s13
      %s15 = sshll.u32 [#allocation2], 4
      %s16 = int_to_ptr.vmem [resolvable:$true] %s15
      %21 = dma.hbm_to_vmem [thread:$0]  %s0, 1024, %s16, [#allocation3], 64, 64, 4
    $region5: #{tpu_custom_call.1} parent=1 // pred_fallthru
      _
    // Predicated region
    $region6: #{tpu_custom_call.1} parent=1 // pred_check
      _
    $region7: #{tpu_custom_call.1} parent=1 // pred_check_branch
      %23 = sbr.rel (0) target = $region9
    $region8: #{tpu_custom_call.1} parent=1 // pred_region
      %s25 = ssub.s32 1024, 1024
      %26 = vsyncadd [#allocation6], %s25
      %s27 = sshll.u32 [#allocation5], 4
      %s28 = int_to_ptr.vmem [resolvable:$true] %s27
      %33 = dma.hbm_to_vmem [thread:$0]  %s1, 1024, %s28, [#allocation6], 64, 64, 4
    $region9: #{tpu_custom_call.1} parent=1 // pred_fallthru
      _
    // Predicated region
    $region10: #{tpu_custom_call.1} parent=1 // pred_check
      _
    $region11: #{tpu_custom_call.1} parent=1 // pred_check_branch
      %35 = sbr.rel (0) target = $region13
    $region12: #{tpu_custom_call.1} parent=1 // pred_region
      %36 = dma.done [#allocation3], 1024
    $region13: #{tpu_custom_call.1} parent=1 // pred_fallthru
      _
    // Predicated region
    $region14: #{tpu_custom_call.1} parent=1 // pred_check
      _
    $region15: #{tpu_custom_call.1} parent=1 // pred_check_branch
      %38 = sbr.rel (0) target = $region17
    $region16: #{tpu_custom_call.1} parent=1 // pred_region
      %39 = dma.done [#allocation6], 1024
    $region17: #{tpu_custom_call.1} parent=1 // pred_fallthru
      _
    %v41 = vld [vmem:[#allocation2] sm:$0xf]
    %v42 = vld [vmem:[#allocation2 + $0x4] sm:$0xf]
    %v43 = vld [vmem:[#allocation2 + $0x8] sm:$0xf]
    %v44 = vld [vmem:[#allocation2 + $0xc] sm:$0xf]
    %v45 = vld [vmem:[#allocation2 + $0x10] sm:$0xf]
    %v46 = vld [vmem:[#allocation2 + $0x14] sm:$0xf]
    %v47 = vld [vmem:[#allocation2 + $0x18] sm:$0xf]
    %v48 = vld [vmem:[#allocation2 + $0x1c] sm:$0xf]
    %v49 = vld [vmem:[#allocation2 + $0x20] sm:$0xf]
    %v50 = vld [vmem:[#allocation2 + $0x24] sm:$0xf]
    %v51 = vld [vmem:[#allocation2 + $0x28] sm:$0xf]
    %v52 = vld [vmem:[#allocation2 + $0x2c] sm:$0xf]
    %v53 = vld [vmem:[#allocation2 + $0x30] sm:$0xf]
    %v54 = vld [vmem:[#allocation2 + $0x34] sm:$0xf]
    %v55 = vld [vmem:[#allocation2 + $0x38] sm:$0xf]
    %v56 = vld [vmem:[#allocation2 + $0x3c] sm:$0xf]
    %v57 = vld [vmem:[#allocation5] sm:$0xf]
    %v58 = vld [vmem:[#allocation5 + $0x4] sm:$0xf]
    %v59 = vld [vmem:[#allocation5 + $0x8] sm:$0xf]
    %v60 = vld [vmem:[#allocation5 + $0xc] sm:$0xf]
    %v61 = vld [vmem:[#allocation5 + $0x10] sm:$0xf]
    %v62 = vld [vmem:[#allocation5 + $0x14] sm:$0xf]
    %v63 = vld [vmem:[#allocation5 + $0x18] sm:$0xf]
    %v64 = vld [vmem:[#allocation5 + $0x1c] sm:$0xf]
    %v65 = vld [vmem:[#allocation5 + $0x20] sm:$0xf]
    %v66 = vld [vmem:[#allocation5 + $0x24] sm:$0xf]
    %v67 = vld [vmem:[#allocation5 + $0x28] sm:$0xf]
    %v68 = vld [vmem:[#allocation5 + $0x2c] sm:$0xf]
    %v69 = vld [vmem:[#allocation5 + $0x30] sm:$0xf]
    %v70 = vld [vmem:[#allocation5 + $0x34] sm:$0xf]
    %v71 = vld [vmem:[#allocation5 + $0x38] sm:$0xf]
    %v72 = vld [vmem:[#allocation5 + $0x3c] sm:$0xf]
    %v89 = vunpack.c.l.b16 %v41
    %v90 = vunpack.c.l.b16 %v42
    %v91 = vunpack.c.l.b16 %v43
    %v92 = vunpack.c.l.b16 %v44
    %v93 = vunpack.c.l.b16 %v45
    %v94 = vunpack.c.l.b16 %v46
    %v95 = vunpack.c.l.b16 %v47
    %v96 = vunpack.c.l.b16 %v48
    %v97 = vunpack.c.l.b16 %v49
    %v98 = vunpack.c.l.b16 %v50
    %v99 = vunpack.c.l.b16 %v51
    %v100 = vunpack.c.l.b16 %v52
    %v101 = vunpack.c.l.b16 %v53
    %v102 = vunpack.c.l.b16 %v54
    %v103 = vunpack.c.l.b16 %v55
    %v104 = vunpack.c.l.b16 %v56
    %v105 = vpack.c.b16 %v90, %v89
    %v106 = vpack.c.b16 %v92, %v91
    %v107 = vpack.c.b16 %v94, %v93
    %v108 = vpack.c.b16 %v96, %v95
    %v109 = vpack.c.b16 %v98, %v97
    %v110 = vpack.c.b16 %v100, %v99
    %v111 = vpack.c.b16 %v102, %v101
    %v112 = vpack.c.b16 %v104, %v103
    %v137 = vunpack.c.l.b16 %v57
    %v138 = vunpack.c.l.b16 %v58
    %v139 = vunpack.c.l.b16 %v59
    %v140 = vunpack.c.l.b16 %v60
    %v141 = vunpack.c.l.b16 %v61
    %v142 = vunpack.c.l.b16 %v62
    %v143 = vunpack.c.l.b16 %v63
    %v144 = vunpack.c.l.b16 %v64
    %v145 = vunpack.c.l.b16 %v65
    %v146 = vunpack.c.l.b16 %v66
    %v147 = vunpack.c.l.b16 %v67
    %v148 = vunpack.c.l.b16 %v68
    %v149 = vunpack.c.l.b16 %v69
    %v150 = vunpack.c.l.b16 %v70
    %v151 = vunpack.c.l.b16 %v71
    %v152 = vunpack.c.l.b16 %v72
    %v153 = vpack.c.b16 %v138, %v137
    %v154 = vpack.c.b16 %v140, %v139
    %v155 = vpack.c.b16 %v142, %v141
    %v156 = vpack.c.b16 %v144, %v143
    %v157 = vpack.c.b16 %v146, %v145
    %v158 = vpack.c.b16 %v148, %v147
    %v159 = vpack.c.b16 %v150, %v149
    %v160 = vpack.c.b16 %v152, %v151
    %169 = vmatprep.subr.bf16.mxu0 0
    %170 = vmatpush1.bf16.msra.mxu0 %v160
    %171 = vmatprep.subr.bf16.mxu0 0
    %172 = vmatpush1.bf16.msra.mxu0 %v159
    %173 = vmatprep.subr.bf16.mxu0 0
    %174 = vmatpush1.bf16.msra.mxu0 %v158
    %175 = vmatprep.subr.bf16.mxu0 0
    %176 = vmatpush1.bf16.msra.mxu0 %v157
    %177 = vmatprep.subr.bf16.mxu0 0
    %178 = vmatpush1.bf16.msra.mxu0 %v156
    %179 = vmatprep.subr.bf16.mxu0 0
    %180 = vmatpush1.bf16.msra.mxu0 %v155
    %181 = vmatprep.subr.bf16.mxu0 0
    %182 = vmatpush1.bf16.msra.mxu0 %v154
    %183 = vmatprep.subr.bf16.mxu0 0
    %184 = vmatpush1.bf16.msra.mxu0 %v153
    %185 = vmatprep.subr.bf16.mxu0 0
    %186 = vmatpush2.bf16.msra.mxu0 0
    %187 = vmatprep.subr.bf16.mxu0 0
    %188 = vmatpush2.bf16.msra.mxu0 0
    %189 = vmatprep.subr.bf16.mxu0 0
    %190 = vmatpush2.bf16.msra.mxu0 0
    %191 = vmatprep.subr.bf16.mxu0 0
    %192 = vmatpush2.bf16.msra.mxu0 0
    %193 = vmatprep.subr.bf16.mxu0 0
    %194 = vmatpush2.bf16.msra.mxu0 0
    %195 = vmatprep.subr.bf16.mxu0 0
    %196 = vmatpush2.bf16.msra.mxu0 0
    %197 = vmatprep.subr.bf16.mxu0 0
    %198 = vmatpush2.bf16.msra.mxu0 0
    %199 = vmatprep.subr.bf16.mxu0 0
    %200 = vmatpush2.bf16.msra.mxu0 0
    %201 = vmatprep.mubr.bf16.mxu0 0
    %202 = vmatmul.mubr.bf16.gmra.mxu0 %v105
    %v203 = vpop.f32.mrf.mxu0
    %v204 = vadd.f32 0.0, %v203
    %v205 = vpop.f32.mrf.mxu0
    %v206 = vpop.f32.mrf.mxu0
    %v207 = vadd.f32 0.0, %v206
    %v208 = vpop.f32.mrf.mxu0
    %209 = vmatprep.mubr.bf16.mxu0 0
    %210 = vmatmul.mubr.bf16.gmra.mxu0 %v106
    %v211 = vpop.f32.mrf.mxu0
    %v212 = vadd.f32 0.0, %v211
    %v213 = vpop.f32.mrf.mxu0
    %v214 = vpop.f32.mrf.mxu0
    %v215 = vadd.f32 0.0, %v214
    %v216 = vpop.f32.mrf.mxu0
    %217 = vmatprep.mubr.bf16.mxu0 0
    %218 = vmatmul.mubr.bf16.gmra.mxu0 %v107
    %v219 = vpop.f32.mrf.mxu0
    %v220 = vadd.f32 0.0, %v219
    %v221 = vpop.f32.mrf.mxu0
    %v222 = vpop.f32.mrf.mxu0
    %v223 = vadd.f32 0.0, %v222
    %v224 = vpop.f32.mrf.mxu0
    %225 = vmatprep.mubr.bf16.mxu0 0
    %226 = vmatmul.mubr.bf16.gmra.mxu0 %v108
    %v227 = vpop.f32.mrf.mxu0
    %v228 = vadd.f32 0.0, %v227
    %v229 = vpop.f32.mrf.mxu0
    %v230 = vpop.f32.mrf.mxu0
    %v231 = vadd.f32 0.0, %v230
    %v232 = vpop.f32.mrf.mxu0
    %233 = vmatprep.mubr.bf16.mxu0 0
    %234 = vmatmul.mubr.bf16.gmra.mxu0 %v109
    %v235 = vpop.f32.mrf.mxu0
    %v236 = vadd.f32 0.0, %v235
    %v237 = vpop.f32.mrf.mxu0
    %v238 = vpop.f32.mrf.mxu0
    %v239 = vadd.f32 0.0, %v238
    %v240 = vpop.f32.mrf.mxu0
    %241 = vmatprep.mubr.bf16.mxu0 0
    %242 = vmatmul.mubr.bf16.gmra.mxu0 %v110
    %v243 = vpop.f32.mrf.mxu0
    %v244 = vadd.f32 0.0, %v243
    %v245 = vpop.f32.mrf.mxu0
    %v246 = vpop.f32.mrf.mxu0
    %v247 = vadd.f32 0.0, %v246
    %v248 = vpop.f32.mrf.mxu0
    %249 = vmatprep.mubr.bf16.mxu0 0
    %250 = vmatmul.mubr.bf16.gmra.mxu0 %v111
    %v251 = vpop.f32.mrf.mxu0
    %v252 = vadd.f32 0.0, %v251
    %v253 = vpop.f32.mrf.mxu0
    %v254 = vpop.f32.mrf.mxu0
    %v255 = vadd.f32 0.0, %v254
    %v256 = vpop.f32.mrf.mxu0
    %257 = vmatprep.mubr.bf16.mxu0 0
    %258 = vmatmul.mubr.bf16.gmra.mxu0 %v112
    %v259 = vpop.f32.mrf.mxu0
    %v260 = vadd.f32 0.0, %v259
    %v261 = vpop.f32.mrf.mxu0
    %v262 = vpop.f32.mrf.mxu0
    %v263 = vadd.f32 0.0, %v262
    %v264 = vpop.f32.mrf.mxu0
    %265 = vdwg.mxu0
    %v266 = vpack.c.bf16 %v207, %v204
    %v267 = vpack.c.bf16 %v215, %v212
    %v268 = vpack.c.bf16 %v223, %v220
    %v269 = vpack.c.bf16 %v231, %v228
    %v270 = vpack.c.bf16 %v239, %v236
    %v271 = vpack.c.bf16 %v247, %v244
    %v272 = vpack.c.bf16 %v255, %v252
    %v273 = vpack.c.bf16 %v263, %v260
    %v282 = vunpack.c.l.b16 %v266
    %v283 = vunpack.c.h.b16 %v266
    %v284 = vunpack.c.l.b16 %v267
    %v285 = vunpack.c.h.b16 %v267
    %v286 = vunpack.c.l.b16 %v268
    %v287 = vunpack.c.h.b16 %v268
    %v288 = vunpack.c.l.b16 %v269
    %v289 = vunpack.c.h.b16 %v269
    %v290 = vunpack.c.l.b16 %v270
    %v291 = vunpack.c.h.b16 %v270
    %v292 = vunpack.c.l.b16 %v271
    %v293 = vunpack.c.h.b16 %v271
    %v294 = vunpack.c.l.b16 %v272
    %v295 = vunpack.c.h.b16 %v272
    %v296 = vunpack.c.l.b16 %v273
    %v297 = vunpack.c.h.b16 %v273
    %v298 = vpack.c.b16 %v282, %v282
    %v299 = vpack.c.b16 %v283, %v283
    %v300 = vpack.c.b16 %v284, %v284
    %v301 = vpack.c.b16 %v285, %v285
    %v302 = vpack.c.b16 %v286, %v286
    %v303 = vpack.c.b16 %v287, %v287
    %v304 = vpack.c.b16 %v288, %v288
    %v305 = vpack.c.b16 %v289, %v289
    %v306 = vpack.c.b16 %v290, %v290
    %v307 = vpack.c.b16 %v291, %v291
    %v308 = vpack.c.b16 %v292, %v292
    %v309 = vpack.c.b16 %v293, %v293
    %v310 = vpack.c.b16 %v294, %v294
    %v311 = vpack.c.b16 %v295, %v295
    %v312 = vpack.c.b16 %v296, %v296
    %v313 = vpack.c.b16 %v297, %v297
    %330 = vst [vmem:[#allocation7] sm:$0xf] %v298
    %331 = vst [vmem:[#allocation7 + $0x4] sm:$0xf] %v299
    %332 = vst [vmem:[#allocation7 + $0x8] sm:$0xf] %v300
    %333 = vst [vmem:[#allocation7 + $0xc] sm:$0xf] %v301
    %334 = vst [vmem:[#allocation7 + $0x10] sm:$0xf] %v302
    %335 = vst [vmem:[#allocation7 + $0x14] sm:$0xf] %v303
    %336 = vst [vmem:[#allocation7 + $0x18] sm:$0xf] %v304
    %337 = vst [vmem:[#allocation7 + $0x1c] sm:$0xf] %v305
    %338 = vst [vmem:[#allocation7 + $0x20] sm:$0xf] %v306
    %339 = vst [vmem:[#allocation7 + $0x24] sm:$0xf] %v307
    %340 = vst [vmem:[#allocation7 + $0x28] sm:$0xf] %v308
    %341 = vst [vmem:[#allocation7 + $0x2c] sm:$0xf] %v309
    %342 = vst [vmem:[#allocation7 + $0x30] sm:$0xf] %v310
    %343 = vst [vmem:[#allocation7 + $0x34] sm:$0xf] %v311
    %344 = vst [vmem:[#allocation7 + $0x38] sm:$0xf] %v312
    %345 = vst [vmem:[#allocation7 + $0x3c] sm:$0xf] %v313
    // Predicated region
    $region18: #{tpu_custom_call.1} parent=1 // pred_check
      _
    $region19: #{tpu_custom_call.1} parent=1 // pred_check_branch
      %347 = sbr.rel (0) target = $region21
    $region20: #{tpu_custom_call.1} parent=1 // pred_region
      %s349 = ssub.s32 1024, 1024
      %350 = vsyncadd [#allocation4], %s349
      %s351 = sshll.u32 [#allocation7], 4
      %s352 = int_to_ptr.vmem [resolvable:$true] %s351
      %357 = dma.vmem_to_hbm [thread:$0]  %s352, 1024, %s2, [#allocation4], 64, 64, 4
    $region21: #{tpu_custom_call.1} parent=1 // pred_fallthru
      _
    // Predicated region
    $region22: #{tpu_custom_call.1} parent=1 // pred_check
      _
    $region23: #{tpu_custom_call.1} parent=1 // pred_check_branch
      %359 = sbr.rel (0) target = $region25
    $region24: #{tpu_custom_call.1} parent=1 // pred_region
      %360 = dma.done [#allocation4], 1024
    $region25: #{tpu_custom_call.1} parent=1 // pred_fallthru
      _
    %361 = vsyncpa [#allocation3], 1
    %362 = vsyncpa [#allocation6], 1
    %363 = vsyncpa [#allocation4], 1

</llo_original>
